<compile_context>
chip_gen: v7x
topology: tpu7x:2x2x1
jax: 0.10.0
libtpu: 0.0.40
codegen_flags: <defaults>
</compile_context>

<pallas_src>
import functools

import jax
import jax.numpy as jnp
from jax import lax
from jax.experimental import pallas as pl
from jax.experimental.pallas import tpu as pltpu

_LANES = 128
_SUBLANES = 8


def _cdiv(a, b):
    return -(-a // b)


def _detect_v7x():
    try:
        return "v7" in jax.devices()[0].device_kind.lower()
    except Exception:
        return False


def _logfx_mse_kernel(pred_ref, targ_ref, out_ref, *, feat, n_valid_rows,
                      block_rows, inner_blocks, lane_only_mask):
    c = pl.program_id(0)          # split axis (CORE_PARALLEL on v7x)
    i = pl.program_id(1)          # streaming / reduction step

    @pl.when(i == 0)
    def _init():
        out_ref[...] = jnp.zeros_like(out_ref)

    g = c * inner_blocks + i              # global (unclamped) block index
    row0 = g * block_rows                 # first global row of this block
    full = row0 + block_rows <= n_valid_rows

    lanes = lax.broadcasted_iota(jnp.int32, (1, _LANES), 1)

    def _accumulate(mask_rows):
        # Load in native dtype, upcast in-vreg (no wrapper-side f32 HBM copy).
        d = (pred_ref[...].astype(jnp.float32)
             - targ_ref[...].astype(jnp.float32))
        sq = d * d

        need_rows = mask_rows or (not lane_only_mask)
        rows = (lax.broadcasted_iota(jnp.int32, sq.shape, 0)
                if need_rows else None)

        if lane_only_mask:
            # 128 % F == 0 -> "is feature-column 1" depends only on the lane.
            keep = (lanes % feat) == 1                          # (1, 128)
        else:
            # column = (r*128 + lane) % F, rewritten without the full flat
            # offset so int32 never overflows for any supported B*F < 2**31.
            r = row0 + rows
            keep = ((r * (_LANES % feat) + lanes) % feat) == 1  # (blk, 128)

        if mask_rows:
            # Rows past the real data (Pallas block clipping) are undefined;
            # only the ragged last block pays this check (gated by pl.when).
            keep = jnp.logical_and(keep, (row0 + rows) < n_valid_rows)

        sq = jnp.where(keep, sq, 0.0)

        if block_rows % _SUBLANES == 0:
            # Pure vreg adds over sublane groups; accumulate into the whole
            # lane-dense (8, 128) resident output block.
            out_ref[...] += jnp.sum(sq.reshape(-1, _SUBLANES, _LANES), axis=0)
        else:
            # Small single-block case (block == full array, rows not 8-aligned).
            out_ref[0:1, :] += jnp.sum(sq, axis=0, keepdims=True)

    @pl.when(full)
    def _steady():
        _accumulate(mask_rows=False)

    @pl.when(jnp.logical_not(full))
    def _ragged_tail():
        _accumulate(mask_rows=True)


def logfx_loss(predictions, targets, *, tile_rows=None, num_splits=None):
    """Pallas equivalent of LogfxLoss.forward(predictions, targets)."""
    assert predictions.shape == targets.shape
    assert predictions.ndim == 2 and predictions.shape[1] >= 2
    B, F = predictions.shape
    total = B * F
    assert total < 2 ** 31, "int32 row/flat indexing would overflow"

    is_v7x = _detect_v7x()
    if num_splits is None:
        num_splits = 2 if is_v7x else 1

    # ---- Lane-dense view: [B, F] -> (n_rows, 128), row-major ---------------
    # Pad only to the 128-lane boundary.  When B*F % 128 == 0 this is a free
    # reshape (no extra HBM pass); otherwise the pad is at most 127 zeros.
    n_rows = _cdiv(total, _LANES)
    pad = n_rows * _LANES - total

    def _prep(x):
        flat = x.reshape(-1)
        if pad:
            flat = jnp.pad(flat, (0, pad))
        return flat.reshape(n_rows, _LANES)

    p2, t2 = _prep(predictions), _prep(targets)

    # ---- Tile selection -----------------------------------------------------
    # ~2 MiB per input per grid step (>= ~85% of HBM roofline); double-buffered
    # working set = 2 inputs x 2 buffers x 2 MiB = 8 MiB, safe on every chip.
    itemsize = max(predictions.dtype.itemsize, targets.dtype.itemsize)
    if tile_rows is None:
        tile_rows = (2 * 1024 * 1024) // (_LANES * itemsize)  # 4096 f32 / 8192 bf16
    cap = max(_SUBLANES, (tile_rows // _SUBLANES) * _SUBLANES)

    if n_rows <= cap:
        block_rows = n_rows          # single full-extent block (any row count)
    else:
        block_rows = cap             # multiple of 8; ragged tail masked in-kernel

    n_blocks = _cdiv(n_rows, block_rows)
    num_splits = max(1, min(num_splits, n_blocks))
    inner_blocks = _cdiv(n_blocks, num_splits)
    last_block = n_blocks - 1

    lane_only_mask = (_LANES % F) == 0

    kernel = functools.partial(
        _logfx_mse_kernel,
        feat=F, n_valid_rows=n_rows, block_rows=block_rows,
        inner_blocks=inner_blocks, lane_only_mask=lane_only_mask)

    def in_map(c, i):
        # Clamp so every DMA window starts inside the array; blocks past the
        # end contribute zero via the in-kernel row mask.
        return (jnp.minimum(c * inner_blocks + i, last_block), 0)

    split_dim = (pltpu.CORE_PARALLEL if (num_splits > 1 and is_v7x)
                 else pltpu.ARBITRARY)
    dims = (split_dim, pltpu.ARBITRARY)

    bytes_in = n_rows * _LANES * (p2.dtype.itemsize + t2.dtype.itemsize)
    partials = pl.pallas_call(
        kernel,
        out_shape=jax.ShapeDtypeStruct((num_splits * _SUBLANES, _LANES),
                                       jnp.float32),
        grid=(num_splits, inner_blocks),
        in_specs=[
            pl.BlockSpec((block_rows, _LANES), in_map),
            pl.BlockSpec((block_rows, _LANES), in_map),
        ],
        out_specs=pl.BlockSpec((_SUBLANES, _LANES), lambda c, i: (c, 0)),
        compiler_params=pltpu.CompilerParams(dimension_semantics=dims),
        cost_estimate=pl.CostEstimate(
            flops=6 * n_rows * _LANES,
            transcendentals=0,
            bytes_accessed=bytes_in + num_splits * _SUBLANES * _LANES * 4),
    )(p2, t2)

    # Tiny final 8->1 sublane + cross-lane reduce; mean over the batch size.
    return jnp.sum(partials) / jnp.float32(B)


if __name__ == "__main__":
    key = jax.random.PRNGKey(0)
    k1, k2, k3, k4, k5, k6 = jax.random.split(key, 6)

    # 1) Small shape matching the PyTorch module's [:, 1] indexing: [batch, 2].
    B, F = 8, 2
    predictions = jax.random.normal(k1, (B, F), dtype=jnp.float32)
    targets = jax.random.normal(k2, (B, F), dtype=jnp.float32)
    loss = jax.block_until_ready(logfx_loss(predictions, targets))
    ref = jnp.mean((predictions[:, 1] - targets[:, 1]) ** 2)
    assert jnp.allclose(loss, ref, rtol=1e-5, atol=1e-6), (loss, ref)

    # 2) Large aligned bf16 case: B*F % 128 == 0 -> zero-copy reshape, single
    #    full-extent block, in-kernel upcast path.
    B2, F2 = 200_000, 2
    p_big = jax.random.normal(k3, (B2, F2), dtype=jnp.float32).astype(jnp.bfloat16)
    t_big = jax.random.normal(k4, (B2, F2), dtype=jnp.float32).astype(jnp.bfloat16)
    loss2 = jax.block_until_ready(logfx_loss(p_big, t_big))
    ref2 = jnp.mean((p_big[:, 1].astype(jnp.float32)
                     - t_big[:, 1].astype(jnp.float32)) ** 2)
    assert jnp.allclose(loss2, ref2, rtol=1e-3, atol=1e-5), (loss2, ref2)

    # 3) Unaligned f32 case with F=3 (general column-mask fallback), multi-block
    #    grid with a ragged last block, and an explicit 2-way split axis.
    B3, F3 = 300_001, 3
    p3 = jax.random.normal(k5, (B3, F3), dtype=jnp.float32)
    t3 = jax.random.normal(k6, (B3, F3), dtype=jnp.float32)
    loss3 = jax.block_until_ready(logfx_loss(p3, t3, num_splits=2))
    ref3 = jnp.mean((p3[:, 1] - t3[:, 1]) ** 2)
    assert jnp.allclose(loss3, ref3, rtol=1e-4, atol=1e-6), (loss3, ref3)

    print("KERNEL_OK")
</pallas_src>

<mosaic_0001>
module attributes {stable_mosaic.version = 11 : i64} {
  func.func @_logfx_mse_kernel(%arg0: i32, %arg1: i32, %arg2: memref<1x128xf32, #tpu.memory_space<vmem>>, %arg3: memref<1x128xf32, #tpu.memory_space<vmem>>, %arg4: memref<8x128xf32, #tpu.memory_space<vmem>>) attributes {dimension_semantics = [#tpu.dimension_semantics<arbitrary>, #tpu.dimension_semantics<arbitrary>], iteration_bounds = array<i64: 1, 1>, scalar_prefetch = 0 : i64, scratch_operands = 0 : i64, tpu.core_type = #tpu.core_type<tc>, window_params = [{transform_indices = @transform_0, window_bounds = array<i64: 1, 128>}, {transform_indices = @transform_1, window_bounds = array<i64: 1, 128>}, {transform_indices = @transform_2, window_bounds = array<i64: 8, 128>}]} {
    %c0_i32 = arith.constant 0 : i32
    %0 = arith.cmpi eq, %arg1, %c0_i32 : i32
    %1 = arith.extui %0 : i1 to i32
    %c0_i32_0 = arith.constant 0 : i32
    %2 = arith.cmpi ne, %1, %c0_i32_0 : i32
    scf.if %2 {
      %cst = arith.constant 0.000000e+00 : f32
      %14 = vector.broadcast %cst : f32 to vector<8x128xf32>
      %c0 = arith.constant 0 : index
      %c0_6 = arith.constant 0 : index
      %15 = vector.load %arg4[%c0, %c0_6] : memref<8x128xf32, #tpu.memory_space<vmem>>, vector<8x128xf32>
      tpu.vector_store %arg4[%c0, %c0_6], %14 {strides = array<i32>} : memref<8x128xf32, #tpu.memory_space<vmem>>, vector<8x128xf32>,
    } else {
    }
    %c1_i32 = arith.constant 1 : i32
    %3 = arith.muli %arg0, %c1_i32 : i32
    %4 = arith.addi %3, %arg1 : i32
    %c1_i32_1 = arith.constant 1 : i32
    %5 = arith.muli %4, %c1_i32_1 : i32
    %c1_i32_2 = arith.constant 1 : i32
    %6 = arith.addi %5, %c1_i32_2 : i32
    %c1_i32_3 = arith.constant 1 : i32
    %7 = arith.cmpi sle, %6, %c1_i32_3 : i32
    %8 = tpu.iota {dimensions = array<i32: 1>} : vector<1x128xi32>
    %9 = arith.extui %7 : i1 to i32
    %c0_i32_4 = arith.constant 0 : i32
    %10 = arith.cmpi ne, %9, %c0_i32_4 : i32
    scf.if %10 {
      %c0 = arith.constant 0 : index
      %c0_6 = arith.constant 0 : index
      %14 = vector.load %arg2[%c0, %c0_6] : memref<1x128xf32, #tpu.memory_space<vmem>>, vector<1x128xf32>
      %c0_7 = arith.constant 0 : index
      %c0_8 = arith.constant 0 : index
      %15 = vector.load %arg3[%c0_7, %c0_8] : memref<1x128xf32, #tpu.memory_space<vmem>>, vector<1x128xf32>
      %16 = arith.subf %14, %15 : vector<1x128xf32>
      %17 = arith.mulf %16, %16 : vector<1x128xf32>
      %c2_i32 = arith.constant 2 : i32
      %c0_i32_9 = arith.constant 0 : i32
      %18 = arith.cmpi eq, %c2_i32, %c0_i32_9 : i32
      %c1_i32_10 = arith.constant 1 : i32
      %19 = arith.select %18, %c1_i32_10, %c2_i32 : i32
      %20 = vector.broadcast %19 : i32 to vector<1x128xi32>
      %21 = arith.remsi %8, %20 : vector<1x128xi32>
      %c0_i32_11 = arith.constant 0 : i32
      %22 = vector.broadcast %c0_i32_11 : i32 to vector<1x128xi32>
      %23 = arith.cmpi ne, %21, %22 : vector<1x128xi32>
      %c0_i32_12 = arith.constant 0 : i32
      %24 = vector.broadcast %c0_i32_12 : i32 to vector<1x128xi32>
      %25 = arith.cmpi slt, %21, %24 : vector<1x128xi32>
      %c0_i32_13 = arith.constant 0 : i32
      %26 = arith.cmpi slt, %19, %c0_i32_13 : i32
      %27 = vector.broadcast %26 : i1 to vector<1x128xi1>
      %28 = vector.broadcast %27 : vector<1x128xi1> to vector<1x128xi1>
      %29 = arith.xori %25, %28 : vector<1x128xi1>
      %30 = arith.andi %29, %23 : vector<1x128xi1>
      %31 = vector.broadcast %19 : i32 to vector<1x128xi32>
      %32 = arith.addi %21, %31 : vector<1x128xi32>
      %33 = arith.select %30, %32, %21 : vector<1x128xi1>, vector<1x128xi32>
      %c1_i32_14 = arith.constant 1 : i32
      %34 = vector.broadcast %c1_i32_14 : i32 to vector<1x128xi32>
      %35 = arith.cmpi eq, %33, %34 : vector<1x128xi32>
      %cst = arith.constant 0.000000e+00 : f32
      %36 = vector.broadcast %cst : f32 to vector<1x128xf32>
      %37 = arith.select %35, %17, %36 : vector<1x128xi1>, vector<1x128xf32>
      %c0_15 = arith.constant 0 : index
      %c0_16 = arith.constant 0 : index
      %38 = vector.load %arg4[%c0_15, %c0_16] : memref<8x128xf32, #tpu.memory_space<vmem>>, vector<1x128xf32>
      %cst_17 = arith.constant dense<0.000000e+00> : vector<128xf32>
      %39 = vector.multi_reduction <add>, %37, %cst_17 [0] : vector<1x128xf32> to vector<128xf32>
      %40 = vector.shape_cast %39 : vector<128xf32> to vector<1x128xf32>
      %41 = arith.addf %38, %40 : vector<1x128xf32>
      %c0_18 = arith.constant 0 : index
      %c0_19 = arith.constant 0 : index
      %42 = vector.load %arg4[%c0_18, %c0_19] : memref<8x128xf32, #tpu.memory_space<vmem>>, vector<1x128xf32>
      tpu.vector_store %arg4[%c0_18, %c0_19], %41 {strides = array<i32>} : memref<8x128xf32, #tpu.memory_space<vmem>>, vector<1x128xf32>,
    } else {
    }
    %true = arith.constant true
    %11 = arith.xori %7, %true : i1
    %12 = arith.extui %11 : i1 to i32
    %c0_i32_5 = arith.constant 0 : i32
    %13 = arith.cmpi ne, %12, %c0_i32_5 : i32
    scf.if %13 {
      %c0 = arith.constant 0 : index
      %c0_6 = arith.constant 0 : index
      %14 = vector.load %arg2[%c0, %c0_6] : memref<1x128xf32, #tpu.memory_space<vmem>>, vector<1x128xf32>
      %c0_7 = arith.constant 0 : index
      %c0_8 = arith.constant 0 : index
      %15 = vector.load %arg3[%c0_7, %c0_8] : memref<1x128xf32, #tpu.memory_space<vmem>>, vector<1x128xf32>
      %16 = arith.subf %14, %15 : vector<1x128xf32>
      %17 = arith.mulf %16, %16 : vector<1x128xf32>
      %18 = tpu.iota {dimensions = array<i32: 0>} : vector<1x128xi32>
      %c2_i32 = arith.constant 2 : i32
      %c0_i32_9 = arith.constant 0 : i32
      %19 = arith.cmpi eq, %c2_i32, %c0_i32_9 : i32
      %c1_i32_10 = arith.constant 1 : i32
      %20 = arith.select %19, %c1_i32_10, %c2_i32 : i32
      %21 = vector.broadcast %20 : i32 to vector<1x128xi32>
      %22 = arith.remsi %8, %21 : vector<1x128xi32>
      %c0_i32_11 = arith.constant 0 : i32
      %23 = vector.broadcast %c0_i32_11 : i32 to vector<1x128xi32>
      %24 = arith.cmpi ne, %22, %23 : vector<1x128xi32>
      %c0_i32_12 = arith.constant 0 : i32
      %25 = vector.broadcast %c0_i32_12 : i32 to vector<1x128xi32>
      %26 = arith.cmpi slt, %22, %25 : vector<1x128xi32>
      %c0_i32_13 = arith.constant 0 : i32
      %27 = arith.cmpi slt, %20, %c0_i32_13 : i32
      %28 = vector.broadcast %27 : i1 to vector<1x128xi1>
      %29 = vector.broadcast %28 : vector<1x128xi1> to vector<1x128xi1>
      %30 = arith.xori %26, %29 : vector<1x128xi1>
      %31 = arith.andi %30, %24 : vector<1x128xi1>
      %32 = vector.broadcast %20 : i32 to vector<1x128xi32>
      %33 = arith.addi %22, %32 : vector<1x128xi32>
      %34 = arith.select %31, %33, %22 : vector<1x128xi1>, vector<1x128xi32>
      %c1_i32_14 = arith.constant 1 : i32
      %35 = vector.broadcast %c1_i32_14 : i32 to vector<1x128xi32>
      %36 = arith.cmpi eq, %34, %35 : vector<1x128xi32>
      %37 = vector.broadcast %5 : i32 to vector<1x128xi32>
      %38 = arith.addi %37, %18 : vector<1x128xi32>
      %c1_i32_15 = arith.constant 1 : i32
      %39 = vector.broadcast %c1_i32_15 : i32 to vector<1x128xi32>
      %40 = arith.cmpi slt, %38, %39 : vector<1x128xi32>
      %41 = arith.andi %36, %40 : vector<1x128xi1>
      %cst = arith.constant 0.000000e+00 : f32
      %42 = vector.broadcast %cst : f32 to vector<1x128xf32>
      %43 = arith.select %41, %17, %42 : vector<1x128xi1>, vector<1x128xf32>
      %c0_16 = arith.constant 0 : index
      %c0_17 = arith.constant 0 : index
      %44 = vector.load %arg4[%c0_16, %c0_17] : memref<8x128xf32, #tpu.memory_space<vmem>>, vector<1x128xf32>
      %cst_18 = arith.constant dense<0.000000e+00> : vector<128xf32>
      %45 = vector.multi_reduction <add>, %43, %cst_18 [0] : vector<1x128xf32> to vector<128xf32>
      %46 = vector.shape_cast %45 : vector<128xf32> to vector<1x128xf32>
      %47 = arith.addf %44, %46 : vector<1x128xf32>
      %c0_19 = arith.constant 0 : index
      %c0_20 = arith.constant 0 : index
      %48 = vector.load %arg4[%c0_19, %c0_20] : memref<8x128xf32, #tpu.memory_space<vmem>>, vector<1x128xf32>
      tpu.vector_store %arg4[%c0_19, %c0_20], %47 {strides = array<i32>} : memref<8x128xf32, #tpu.memory_space<vmem>>, vector<1x128xf32>,
    } else {
    }
    return
  }
  func.func @transform_0(%arg0: i32, %arg1: i32) -> (i32, i32) {
    %c1_i32 = arith.constant 1 : i32
    %0 = arith.muli %arg0, %c1_i32 : i32
    %1 = arith.addi %0, %arg1 : i32
    %c0_i32 = arith.constant 0 : i32
    %2 = arith.minsi %1, %c0_i32 : i32
    %c0_i32_0 = arith.constant 0 : i32
    %c0_i32_1 = arith.constant 0 : i32
    return %2, %c0_i32_0 : i32, i32
  }
  func.func @transform_1(%arg0: i32, %arg1: i32) -> (i32, i32) {
    %c1_i32 = arith.constant 1 : i32
    %0 = arith.muli %arg0, %c1_i32 : i32
    %1 = arith.addi %0, %arg1 : i32
    %c0_i32 = arith.constant 0 : i32
    %2 = arith.minsi %1, %c0_i32 : i32
    %c0_i32_0 = arith.constant 0 : i32
    %c0_i32_1 = arith.constant 0 : i32
    return %2, %c0_i32_0 : i32, i32
  }
  func.func @transform_2(%arg0: i32, %arg1: i32) -> (i32, i32) {
    %c0_i32 = arith.constant 0 : i32
    %c0_i32_0 = arith.constant 0 : i32
    return %arg0, %c0_i32 : i32, i32
  }
}

</mosaic_0001>

<llo_original>
// kernel: tpu_custom_call.1
$region0: #{tpu_custom_call.1}
  #allocation0 [shape = 'u32[]', space=smem, size = 0x4, offset = 0x4, fixed_abs, tag = 'smem constant byte address 0x4 - core index']
  #allocation1 [shape = 'u32[144,128]{1,0:T(1,128)}', space=vmem, size = 0x12000, scoped, tag = 'internal scratch']
  %s0 = inlined_call_operand.hbm [shape: f32[1,128], index: 0, kind: input, shape index: {}]
  %s1 = inlined_call_operand.vmem [shape: f32[1,128], index: 1, kind: input, shape index: {}]
  %s2 = inlined_call_operand.hbm [shape: f32[8,128], index: 2, kind: output, shape index: {}]
  %s3 = sld [smem:[#allocation0]]
  $region34: #{tpu_custom_call.1} parent=0
    _
  %s5 = ssub.s32 1, %s3
  %s6 = scalar_select 0, %s5, %s3
  $region1: #{tpu_custom_call.1} parent=0
    #allocation2 [shape = 'u8[512]{0}', space=vmem, size = 0x400, scoped, tag = 'input window, operand 0, single buffered']
    #allocation3 [shape = 's32[1]{0}', space=sflag, size = 0x4, scoped, tag = 'scoped memory for tpu_custom_call.1']
    #allocation4 [shape = 's32[1]{0}', space=sflag, size = 0x4, scoped, tag = 'scoped memory for tpu_custom_call.1']
    #allocation5 [shape = 'u8[4096]{0}', space=vmem, size = 0x1000, scoped, tag = 'output window, operand 0, single buffered']
    %7 = vsyncpa [#allocation3], 0
    %8 = vsyncpa [#allocation4], 0
    // Predicated region
    $region2: #{tpu_custom_call.1} parent=1 // pred_check
      _
    $region3: #{tpu_custom_call.1} parent=1 // pred_check_branch
      %10 = sbr.rel (0) target = $region5
    $region4: #{tpu_custom_call.1} parent=1 // pred_region
      %s11 = sadd.s32 0, 0
      %p12 = scmp.lt.s32.totalorder %s11, 0
      %s13 = scalar_select %p12, %s11, 0
      %s15 = ssub.s32 16, 16
      %16 = vsyncadd [#allocation3], %s15
      %s17 = smul.addr %s13, 16
      %s18 = scalar_lea.hbm %s0, %s17
      %s20 = sshll.u32 [#allocation2], 4
      %s21 = int_to_ptr.vmem [resolvable:$true] %s20
      %23 = dma.hbm_to_vmem [thread:$0]  %s18, 16, %s21, [#allocation3]
    $region5: #{tpu_custom_call.1} parent=1 // pred_fallthru
      _
    // Predicated region
    $region6: #{tpu_custom_call.1} parent=1 // pred_check
      _
    $region7: #{tpu_custom_call.1} parent=1 // pred_check_branch
      %25 = sbr.rel (0) target = $region9
    $region8: #{tpu_custom_call.1} parent=1 // pred_region
      %s26 = sadd.s32 0, 0
      %p27 = scmp.lt.s32.totalorder %s26, 0
      %s28 = scalar_select %p27, %s26, 0
      %p29 = scmp.lt.s32.totalorder %s28, 0
      %s30 = scalar_select %p29, %s28, 0
      %s31 = scalar_lea.vmem %s1, %s30
      %s32 = sadd.s32 0, 0
      %p33 = scmp.lt.s32.totalorder %s32, 0
      %s34 = scalar_select %p33, %s32, 0
    $region9: #{tpu_custom_call.1} parent=1 // pred_fallthru
      _
    // Predicated region
    $region10: #{tpu_custom_call.1} parent=1 // pred_check
      _
    $region11: #{tpu_custom_call.1} parent=1 // pred_check_branch
      %36 = sbr.rel (0) target = $region13
    $region12: #{tpu_custom_call.1} parent=1 // pred_region
      %37 = dma.done [#allocation3], 16
    $region13: #{tpu_custom_call.1} parent=1 // pred_fallthru
      _
    %s38 = sadd.s32 0, 0
    %p39 = scmp.lt.s32.totalorder %s38, 0
    %s40 = scalar_select %p39, %s38, 0
    %p41 = scmp.lt.s32.totalorder %s40, 0
    %s42 = scalar_select %p41, %s40, 0
    %s43 = scalar_lea.vmem %s1, %s42
    %s44 = sadd.s32 0, 0
    %p45 = scmp.lt.s32.totalorder %s44, 0
    %s46 = scalar_select %p45, %s44, 0
    %s47 = sadd.s32 0, 0
    %p48 = scmp.lt.s32.totalorder %s47, 0
    %s49 = scalar_select %p48, %s47, 0
    %p50 = scmp.lt.s32.totalorder %s49, 0
    %s51 = scalar_select %p50, %s49, 0
    %s52 = scalar_lea.vmem %s1, %s51
    %s53 = sadd.s32 0, 0
    %p54 = scmp.lt.s32.totalorder %s53, 0
    %s55 = scalar_select %p54, %s53, 0
    %p56 = scmp.eq.s32.totalorder 0, 0
    // Predicated region
    $region14: #{tpu_custom_call.1} parent=1 // pred_check
      %p57 = pneg %p56
    $region15: #{tpu_custom_call.1} parent=1 // pred_check_branch
      %59 = sbr.rel (%p57) target = $region17
    $region16: #{tpu_custom_call.1} parent=1 // pred_region
      %60 = vst [vmem:[#allocation5] sm:$0xff] 0.0
    $region17: #{tpu_custom_call.1} parent=1 // pred_fallthru
      _
    %s61 = sadd.s32 0, 0
    %s62 = sadd.s32 %s61, 1
    %p63 = scmp.le.s32.totalorder %s62, 1
    %v64 = vlaneseq
    %v65 = vand.u32 %v64, 127
    // Predicated region
    $region18: #{tpu_custom_call.1} parent=1 // pred_check
      %p66 = pneg %p63
    $region19: #{tpu_custom_call.1} parent=1 // pred_check_branch
      %68 = sbr.rel (%p66) target = $region21
    $region20: #{tpu_custom_call.1} parent=1 // pred_region
      %v69 = vld [vmem:[#allocation2] sm:$0x1]
      %v70 = vld [vmem:[%s52] sm:$0x1]
      %v71 = vsub.f32 %v69, %v70
      %v72 = vmul.f32 %v71, %v71
      %vm73 = vcmp.lt.s32.totalorder %v65, 0
      %v74 = vsub.s32 0, %v65
      %v75 = vsel %vm73, %v74, %v65
      %v76 = vshrl.u32 %v75, 1
      %v77 = vand.u32 %v75, 1
      %v78 = vsub.s32 0, %v77
      %v79 = vsel %vm73, %v78, %v77
      %vm80 = vcmp.ne.s32.totalorder %v79, 0
      %vm81 = vcmp.lt.s32.totalorder %v79, 0
      %vm82 = vmand %vm81, %vm80
      %v83 = vadd.s32 %v79, 2
      %v84 = vsel %vm82, %v83, %v79
      %vm85 = vcmp.eq.s32.totalorder %v84, 1
      %v86 = vsel %vm85, %v72, 0.0
      %v87 = vld [vmem:[#allocation5] sm:$0x1]
      %v88 = vadd.f32 %v86, 0.0
      %v89 = vadd.f32 %v87, %v88
      %90 = vst [vmem:[#allocation5] sm:$0x1] %v89
    $region21: #{tpu_custom_call.1} parent=1 // pred_fallthru
      _
    %p91 = scmp.gt.s32.totalorder %s62, 1
    // Predicated region
    $region22: #{tpu_custom_call.1} parent=1 // pred_check
      %p92 = pneg %p91
    $region23: #{tpu_custom_call.1} parent=1 // pred_check_branch
      %94 = sbr.rel (%p92) target = $region25
    $region24: #{tpu_custom_call.1} parent=1 // pred_region
      %v95 = vld [vmem:[#allocation2] sm:$0x1]
      %v96 = vld [vmem:[%s52] sm:$0x1]
      %v97 = vsub.f32 %v95, %v96
      %v98 = vmul.f32 %v97, %v97
      %v99 = vlaneseq
      %v100 = vshrl.u32 %v99, 7
      %vm101 = vcmp.lt.s32.totalorder %v65, 0
      %v102 = vsub.s32 0, %v65
      %v103 = vsel %vm101, %v102, %v65
      %v104 = vshrl.u32 %v103, 1
      %v105 = vand.u32 %v103, 1
      %v106 = vsub.s32 0, %v105
      %v107 = vsel %vm101, %v106, %v105
      %vm108 = vcmp.ne.s32.totalorder %v107, 0
      %vm109 = vcmp.lt.s32.totalorder %v107, 0
      %vm110 = vmand %vm109, %vm108
      %v111 = vadd.s32 %v107, 2
      %v112 = vsel %vm110, %v111, %v107
      %vm113 = vcmp.eq.s32.totalorder %v112, 1
      %v114 = vstv %s61
      %v115 = vadd.s32 %v114, %v100
      %vm116 = vcmp.lt.s32.totalorder %v115, 1
      %vm117 = vmand %vm113, %vm116
      %v118 = vsel %vm117, %v98, 0.0
      %v119 = vld [vmem:[#allocation5] sm:$0x1]
      %v120 = vadd.f32 %v118, 0.0
      %v121 = vadd.f32 %v119, %v120
      %122 = vst [vmem:[#allocation5] sm:$0x1] %v121
    $region25: #{tpu_custom_call.1} parent=1 // pred_fallthru
      _
    // Predicated region
    $region26: #{tpu_custom_call.1} parent=1 // pred_check
      _
    $region27: #{tpu_custom_call.1} parent=1 // pred_check_branch
      %124 = sbr.rel (0) target = $region29
    $region28: #{tpu_custom_call.1} parent=1 // pred_region
      %s126 = ssub.s32 128, 128
      %127 = vsyncadd [#allocation4], %s126
      %s129 = sshll.u32 [#allocation5], 4
      %s130 = int_to_ptr.vmem [resolvable:$true] %s129
      %132 = dma.vmem_to_hbm [thread:$0]  %s130, 128, %s2, [#allocation4]
    $region29: #{tpu_custom_call.1} parent=1 // pred_fallthru
      _
    // Predicated region
    $region30: #{tpu_custom_call.1} parent=1 // pred_check
      _
    $region31: #{tpu_custom_call.1} parent=1 // pred_check_branch
      %134 = sbr.rel (0) target = $region33
    $region32: #{tpu_custom_call.1} parent=1 // pred_region
      %135 = dma.done [#allocation4], 128
    $region33: #{tpu_custom_call.1} parent=1 // pred_fallthru
      _
    %136 = vsyncpa [#allocation3], 1
    %137 = vsyncpa [#allocation4], 1

</llo_original>
